<compile_context>
chip_gen: v6e
topology: v6e:2x2x1
jax: 0.10.0
libtpu: 0.0.40
codegen_flags: <defaults>
</compile_context>

<pallas_src>
import functools

import jax
import jax.numpy as jnp
from jax.experimental import pallas as pl
from jax.experimental.pallas import tpu as pltpu


# --------------------------------------------------------------------------
# In-kernel helpers
# --------------------------------------------------------------------------
def _conv3x3(x, w_ref, mask_ref, *, W, mxu_dtype):
    """3x3 'same' conv on one image.

    x:        (C_in, H*W) f32, channel-major, lane dim = H*W.
    w_ref:    (9, C_out, C_in) VMEM ref, tap-major (kh, kw) row-major.
    mask_ref: (9, 1, H*W) VMEM ref of 0/1 f32 per-tap validity masks.
    Returns:  (C_out, H*W) f32 via 9 accumulating MXU matmuls (no tap matrix).
    """
    _, HW = x.shape
    acc = None
    t = 0
    for dh in (-1, 0, 1):
        for dw in (-1, 0, 1):
            d = dh * W + dw
            if d == 0:
                xt = x                                   # center tap: no shift, no mask
            else:
                xt = pltpu.roll(x, shift=(-d) % HW, axis=1) * mask_ref[t]
            contrib = jnp.dot(w_ref[t].astype(mxu_dtype), xt.astype(mxu_dtype),
                              preferred_element_type=jnp.float32)
            acc = contrib if acc is None else acc + contrib
            t += 1
    return acc


def _partial_stats(y):
    # Per-image, per-channel [sum, sumsq] -> (C, 2), lane-axis reductions.
    s = jnp.sum(y, axis=1, keepdims=True)
    ss = jnp.sum(y * y, axis=1, keepdims=True)
    return jnp.concatenate([s, ss], axis=1)


# --------------------------------------------------------------------------
# Kernels (one image per grid step)
# --------------------------------------------------------------------------
def conv1_kernel(x_ref, w_ref, mask_ref, y_ref, st_ref, *, W, mxu_dtype):
    y = _conv3x3(x_ref[...], w_ref, mask_ref, W=W, mxu_dtype=mxu_dtype)
    y_ref[...] = y
    st_ref[...] = _partial_stats(y)


def bn_act_conv2_kernel(y1_ref, sc_ref, sh_ref, w_ref, mask_ref,
                        y2_ref, st_ref, *, W, mxu_dtype):
    z = y1_ref[...] * sc_ref[...] + sh_ref[...]      # BN1 as per-channel affine
    a = jnp.maximum(z, 0.2 * z)                      # LeakyReLU(0.2)
    y = _conv3x3(a, w_ref, mask_ref, W=W, mxu_dtype=mxu_dtype)
    y2_ref[...] = y
    st_ref[...] = _partial_stats(y)


def bn_residual_kernel(y2_ref, sc_ref, sh_ref, x_ref, o_ref):
    o_ref[...] = y2_ref[...] * sc_ref[...] + sh_ref[...] + x_ref[...]


# --------------------------------------------------------------------------
# Wrapper-side (plain JAX) helpers: O(C) / O(H*W) one-time setup
# --------------------------------------------------------------------------
def _tap_weights(w_oihw):
    # OIHW (C_out, C_in, 3, 3) -> (9, C_out, C_in), tap-major (kh, kw) row-major.
    o, i = w_oihw.shape[:2]
    return jnp.transpose(w_oihw, (2, 3, 0, 1)).reshape(9, o, i).astype(jnp.float32)


def _tap_masks(H, W):
    # (9, 1, H*W) 0/1 f32 validity masks for a padding=1 3x3 conv.
    h = jnp.arange(H)[:, None]
    w = jnp.arange(W)[None, :]
    rows = []
    for dh in (-1, 0, 1):
        for dw in (-1, 0, 1):
            m = ((h + dh >= 0) & (h + dh < H) & (w + dw >= 0) & (w + dw < W))
            rows.append(m.reshape(1, H * W))
    return jnp.stack(rows, axis=0).astype(jnp.float32)


def _bn_scale_shift(pstats, gamma, beta, count, eps=1e-5):
    # pstats: (N, C, 2) per-image [sum, sumsq].  Fold training-mode BN into a
    # per-channel affine (scale, shift) applied by the next kernel.
    s = jnp.sum(pstats[:, :, 0], axis=0)
    ss = jnp.sum(pstats[:, :, 1], axis=0)
    mean = s / count
    var = jnp.maximum(ss / count - mean * mean, 0.0)     # clamp before rsqrt
    scale = gamma * jax.lax.rsqrt(var + eps)
    shift = beta - mean * scale
    C = scale.shape[0]
    return (scale.reshape(C, 1).astype(jnp.float32),
            shift.reshape(C, 1).astype(jnp.float32))


# --------------------------------------------------------------------------
# ResidualBlock forward
# --------------------------------------------------------------------------
def residual_block(x_nchw, params, *, mxu_dtype=jnp.float32):
    # mxu_dtype=jnp.bfloat16 is the production choice on v6e/v7x (halves MXU
    # input bytes); kept f32 here so the small-shape check stays within 1e-4.
    N, C, H, W = x_nchw.shape
    HW = H * W
    x = x_nchw.astype(jnp.float32).reshape(N, C, HW)     # free view, no transpose

    w1 = _tap_weights(params["w1"])
    w2 = _tap_weights(params["w2"])
    masks = _tap_masks(H, W)
    # Conv biases b1/b2 are intentionally unused: they cancel against the
    # training-mode BatchNorm batch-mean subtraction.

    img_spec = pl.BlockSpec((None, C, HW), lambda n: (n, 0, 0))
    st_spec = pl.BlockSpec((None, C, 2), lambda n: (n, 0, 0))
    w_spec = pl.BlockSpec((9, C, C), lambda n: (0, 0, 0))
    m_spec = pl.BlockSpec((9, 1, HW), lambda n: (0, 0, 0))
    col_spec = pl.BlockSpec((C, 1), lambda n: (0, 0))
    cparams = pltpu.CompilerParams(dimension_semantics=("parallel",))

    img_f32 = jax.ShapeDtypeStruct((N, C, HW), jnp.float32)
    st_f32 = jax.ShapeDtypeStruct((N, C, 2), jnp.float32)

    # Pass 1: conv1 + per-image BN1 partial stats.
    y1, st1 = pl.pallas_call(
        functools.partial(conv1_kernel, W=W, mxu_dtype=mxu_dtype),
        grid=(N,),
        in_specs=[img_spec, w_spec, m_spec],
        out_specs=[img_spec, st_spec],
        out_shape=[img_f32, st_f32],
        compiler_params=cparams,
    )(x, w1, masks)
    sc1, sh1 = _bn_scale_shift(st1, params["g1"], params["be1"], N * HW)

    # Pass 2: BN1 affine + LeakyReLU + conv2 + per-image BN2 partial stats.
    y2, st2 = pl.pallas_call(
        functools.partial(bn_act_conv2_kernel, W=W, mxu_dtype=mxu_dtype),
        grid=(N,),
        in_specs=[img_spec, col_spec, col_spec, w_spec, m_spec],
        out_specs=[img_spec, st_spec],
        out_shape=[img_f32, st_f32],
        compiler_params=cparams,
    )(y1, sc1, sh1, w2, masks)
    sc2, sh2 = _bn_scale_shift(st2, params["g2"], params["be2"], N * HW)

    # Pass 3: BN2 affine + residual add.
    out = pl.pallas_call(
        bn_residual_kernel,
        grid=(N,),
        in_specs=[img_spec, col_spec, col_spec, img_spec],
        out_specs=img_spec,
        out_shape=img_f32,
        compiler_params=cparams,
    )(y2, sc2, sh2, x)

    return out.reshape(N, C, H, W)                       # free view back to NCHW


# --------------------------------------------------------------------------
# Pure-JAX reference (mirrors the PyTorch module in training mode)
# --------------------------------------------------------------------------
def residual_block_ref(x, p):
    def conv(x, w, b):
        y = jax.lax.conv_general_dilated(
            x, w, window_strides=(1, 1), padding=((1, 1), (1, 1)),
            dimension_numbers=("NCHW", "OIHW", "NCHW"))
        return y + b[None, :, None, None]

    def bn(x, g, be, eps=1e-5):
        mu = x.mean(axis=(0, 2, 3), keepdims=True)
        var = ((x - mu) ** 2).mean(axis=(0, 2, 3), keepdims=True)
        return (x - mu) / jnp.sqrt(var + eps) * g[None, :, None, None] \
            + be[None, :, None, None]

    y = conv(x, p["w1"], p["b1"])
    y = bn(y, p["g1"], p["be1"])
    y = jnp.where(y > 0, y, 0.2 * y)
    y = conv(y, p["w2"], p["b2"])
    y = bn(y, p["g2"], p["be2"])
    return y + x


if __name__ == "__main__":
    key = jax.random.PRNGKey(0)
    ks = jax.random.split(key, 9)
    N, C, H, W = 2, 4, 16, 16

    # deterministic synthetic parameters (shapes from ResidualBlock.__init__)
    params = {
        "w1": 0.1 * jax.random.normal(ks[0], (C, C, 3, 3), jnp.float32),  # OIHW
        "b1": 0.1 * jax.random.normal(ks[1], (C,), jnp.float32),
        "g1": 1.0 + 0.1 * jax.random.normal(ks[2], (C,), jnp.float32),
        "be1": 0.1 * jax.random.normal(ks[3], (C,), jnp.float32),
        "w2": 0.1 * jax.random.normal(ks[4], (C, C, 3, 3), jnp.float32),
        "b2": 0.1 * jax.random.normal(ks[5], (C,), jnp.float32),
        "g2": 1.0 + 0.1 * jax.random.normal(ks[6], (C,), jnp.float32),
        "be2": 0.1 * jax.random.normal(ks[7], (C,), jnp.float32),
    }
    # TODO(synk): BatchNorm running_mean/var momentum buffers are not updated
    # (they do not affect the training-mode forward output).

    x = jax.random.normal(ks[8], (N, C, H, W), jnp.float32)

    out = jax.block_until_ready(residual_block(x, params))
    ref = jax.block_until_ready(residual_block_ref(x, params))

    assert out.shape == (N, C, H, W)
    assert jnp.allclose(out, ref, atol=1e-4, rtol=1e-4), \
        float(jnp.max(jnp.abs(out - ref)))
    print("KERNEL_OK")
</pallas_src>

<mosaic_0001>
module attributes {stable_mosaic.version = 11 : i64} {
  func.func @conv1_kernel(%arg0: i32, %arg1: memref<1x4x256xf32, #tpu.memory_space<vmem>>, %arg2: memref<9x4x4xf32, #tpu.memory_space<vmem>>, %arg3: memref<9x1x256xf32, #tpu.memory_space<vmem>>, %arg4: memref<1x4x256xf32, #tpu.memory_space<vmem>>, %arg5: memref<1x4x2xf32, #tpu.memory_space<vmem>>) attributes {dimension_semantics = [#tpu.dimension_semantics<parallel>], iteration_bounds = array<i64: 2>, scalar_prefetch = 0 : i64, scratch_operands = 0 : i64, tpu.core_type = #tpu.core_type<tc>, window_params = [{transform_indices = @transform_0, window_bounds = array<i64: 1, 4, 256>}, {pipeline_mode = #tpu.pipeline_mode<synchronous>, transform_indices = @transform_1, window_bounds = array<i64: 9, 4, 4>}, {pipeline_mode = #tpu.pipeline_mode<synchronous>, transform_indices = @transform_2, window_bounds = array<i64: 9, 1, 256>}, {transform_indices = @transform_3, window_bounds = array<i64: 1, 4, 256>}, {transform_indices = @transform_4, window_bounds = array<i64: 1, 4, 2>}]} {
    %c0 = arith.constant 0 : index
    %c0_0 = arith.constant 0 : index
    %c0_1 = arith.constant 0 : index
    %0 = vector.load %arg1[%c0, %c0_0, %c0_1] : memref<1x4x256xf32, #tpu.memory_space<vmem>>, vector<1x4x256xf32>
    %1 = vector.shape_cast %0 : vector<1x4x256xf32> to vector<4x256xf32>
    %c17_i32 = arith.constant 17 : i32
    %2 = tpu.dynamic_rotate %1 by %c17_i32 dim 1 : vector<4x256xf32>, i32 -> vector<4x256xf32>
    %c0_2 = arith.constant 0 : index
    %c0_3 = arith.constant 0 : index
    %c0_4 = arith.constant 0 : index
    %3 = vector.load %arg3[%c0_2, %c0_3, %c0_4] : memref<9x1x256xf32, #tpu.memory_space<vmem>>, vector<1x1x256xf32>
    %4 = vector.shape_cast %3 : vector<1x1x256xf32> to vector<1x256xf32>
    %5 = vector.broadcast %4 : vector<1x256xf32> to vector<4x256xf32>
    %6 = arith.mulf %2, %5 : vector<4x256xf32>
    %c0_5 = arith.constant 0 : index
    %c0_6 = arith.constant 0 : index
    %c0_7 = arith.constant 0 : index
    %7 = vector.load %arg2[%c0_5, %c0_6, %c0_7] : memref<9x4x4xf32, #tpu.memory_space<vmem>>, vector<1x4x4xf32>
    %8 = vector.shape_cast %7 : vector<1x4x4xf32> to vector<4x4xf32>
    %cst = arith.constant dense<0.000000e+00> : vector<4x256xf32>
    %9 = tpu.matmul %8, %6, %cst {dimension_numbers = #tpu.dot_dimension_numbers<[1], [0], [0], [1], [0, 0, 1, 1], [], []>} : vector<4x4xf32>, vector<4x256xf32>, vector<4x256xf32> -> vector<4x256xf32>
    %c16_i32 = arith.constant 16 : i32
    %10 = tpu.dynamic_rotate %1 by %c16_i32 dim 1 : vector<4x256xf32>, i32 -> vector<4x256xf32>
    %c1 = arith.constant 1 : index
    %c0_8 = arith.constant 0 : index
    %c0_9 = arith.constant 0 : index
    %11 = vector.load %arg3[%c1, %c0_8, %c0_9] : memref<9x1x256xf32, #tpu.memory_space<vmem>>, vector<1x1x256xf32>
    %12 = vector.shape_cast %11 : vector<1x1x256xf32> to vector<1x256xf32>
    %13 = vector.broadcast %12 : vector<1x256xf32> to vector<4x256xf32>
    %14 = arith.mulf %10, %13 : vector<4x256xf32>
    %c1_10 = arith.constant 1 : index
    %c0_11 = arith.constant 0 : index
    %c0_12 = arith.constant 0 : index
    %15 = vector.load %arg2[%c1_10, %c0_11, %c0_12] : memref<9x4x4xf32, #tpu.memory_space<vmem>>, vector<1x4x4xf32>
    %16 = vector.shape_cast %15 : vector<1x4x4xf32> to vector<4x4xf32>
    %cst_13 = arith.constant dense<0.000000e+00> : vector<4x256xf32>
    %17 = tpu.matmul %16, %14, %cst_13 {dimension_numbers = #tpu.dot_dimension_numbers<[1], [0], [0], [1], [0, 0, 1, 1], [], []>} : vector<4x4xf32>, vector<4x256xf32>, vector<4x256xf32> -> vector<4x256xf32>
    %18 = arith.addf %9, %17 : vector<4x256xf32>
    %c15_i32 = arith.constant 15 : i32
    %19 = tpu.dynamic_rotate %1 by %c15_i32 dim 1 : vector<4x256xf32>, i32 -> vector<4x256xf32>
    %c2 = arith.constant 2 : index
    %c0_14 = arith.constant 0 : index
    %c0_15 = arith.constant 0 : index
    %20 = vector.load %arg3[%c2, %c0_14, %c0_15] : memref<9x1x256xf32, #tpu.memory_space<vmem>>, vector<1x1x256xf32>
    %21 = vector.shape_cast %20 : vector<1x1x256xf32> to vector<1x256xf32>
    %22 = vector.broadcast %21 : vector<1x256xf32> to vector<4x256xf32>
    %23 = arith.mulf %19, %22 : vector<4x256xf32>
    %c2_16 = arith.constant 2 : index
    %c0_17 = arith.constant 0 : index
    %c0_18 = arith.constant 0 : index
    %24 = vector.load %arg2[%c2_16, %c0_17, %c0_18] : memref<9x4x4xf32, #tpu.memory_space<vmem>>, vector<1x4x4xf32>
    %25 = vector.shape_cast %24 : vector<1x4x4xf32> to vector<4x4xf32>
    %cst_19 = arith.constant dense<0.000000e+00> : vector<4x256xf32>
    %26 = tpu.matmul %25, %23, %cst_19 {dimension_numbers = #tpu.dot_dimension_numbers<[1], [0], [0], [1], [0, 0, 1, 1], [], []>} : vector<4x4xf32>, vector<4x256xf32>, vector<4x256xf32> -> vector<4x256xf32>
    %27 = arith.addf %18, %26 : vector<4x256xf32>
    %c1_i32 = arith.constant 1 : i32
    %28 = tpu.dynamic_rotate %1 by %c1_i32 dim 1 : vector<4x256xf32>, i32 -> vector<4x256xf32>
    %c3 = arith.constant 3 : index
    %c0_20 = arith.constant 0 : index
    %c0_21 = arith.constant 0 : index
    %29 = vector.load %arg3[%c3, %c0_20, %c0_21] : memref<9x1x256xf32, #tpu.memory_space<vmem>>, vector<1x1x256xf32>
    %30 = vector.shape_cast %29 : vector<1x1x256xf32> to vector<1x256xf32>
    %31 = vector.broadcast %30 : vector<1x256xf32> to vector<4x256xf32>
    %32 = arith.mulf %28, %31 : vector<4x256xf32>
    %c3_22 = arith.constant 3 : index
    %c0_23 = arith.constant 0 : index
    %c0_24 = arith.constant 0 : index
    %33 = vector.load %arg2[%c3_22, %c0_23, %c0_24] : memref<9x4x4xf32, #tpu.memory_space<vmem>>, vector<1x4x4xf32>
    %34 = vector.shape_cast %33 : vector<1x4x4xf32> to vector<4x4xf32>
    %cst_25 = arith.constant dense<0.000000e+00> : vector<4x256xf32>
    %35 = tpu.matmul %34, %32, %cst_25 {dimension_numbers = #tpu.dot_dimension_numbers<[1], [0], [0], [1], [0, 0, 1, 1], [], []>} : vector<4x4xf32>, vector<4x256xf32>, vector<4x256xf32> -> vector<4x256xf32>
    %36 = arith.addf %27, %35 : vector<4x256xf32>
    %c4 = arith.constant 4 : index
    %c0_26 = arith.constant 0 : index
    %c0_27 = arith.constant 0 : index
    %37 = vector.load %arg2[%c4, %c0_26, %c0_27] : memref<9x4x4xf32, #tpu.memory_space<vmem>>, vector<1x4x4xf32>
    %38 = vector.shape_cast %37 : vector<1x4x4xf32> to vector<4x4xf32>
    %cst_28 = arith.constant dense<0.000000e+00> : vector<4x256xf32>
    %39 = tpu.matmul %38, %1, %cst_28 {dimension_numbers = #tpu.dot_dimension_numbers<[1], [0], [0], [1], [0, 0, 1, 1], [], []>} : vector<4x4xf32>, vector<4x256xf32>, vector<4x256xf32> -> vector<4x256xf32>
    %40 = arith.addf %36, %39 : vector<4x256xf32>
    %c255_i32 = arith.constant 255 : i32
    %41 = tpu.dynamic_rotate %1 by %c255_i32 dim 1 : vector<4x256xf32>, i32 -> vector<4x256xf32>
    %c5 = arith.constant 5 : index
    %c0_29 = arith.constant 0 : index
    %c0_30 = arith.constant 0 : index
    %42 = vector.load %arg3[%c5, %c0_29, %c0_30] : memref<9x1x256xf32, #tpu.memory_space<vmem>>, vector<1x1x256xf32>
    %43 = vector.shape_cast %42 : vector<1x1x256xf32> to vector<1x256xf32>
    %44 = vector.broadcast %43 : vector<1x256xf32> to vector<4x256xf32>
    %45 = arith.mulf %41, %44 : vector<4x256xf32>
    %c5_31 = arith.constant 5 : index
    %c0_32 = arith.constant 0 : index
    %c0_33 = arith.constant 0 : index
    %46 = vector.load %arg2[%c5_31, %c0_32, %c0_33] : memref<9x4x4xf32, #tpu.memory_space<vmem>>, vector<1x4x4xf32>
    %47 = vector.shape_cast %46 : vector<1x4x4xf32> to vector<4x4xf32>
    %cst_34 = arith.constant dense<0.000000e+00> : vector<4x256xf32>
    %48 = tpu.matmul %47, %45, %cst_34 {dimension_numbers = #tpu.dot_dimension_numbers<[1], [0], [0], [1], [0, 0, 1, 1], [], []>} : vector<4x4xf32>, vector<4x256xf32>, vector<4x256xf32> -> vector<4x256xf32>
    %49 = arith.addf %40, %48 : vector<4x256xf32>
    %c241_i32 = arith.constant 241 : i32
    %50 = tpu.dynamic_rotate %1 by %c241_i32 dim 1 : vector<4x256xf32>, i32 -> vector<4x256xf32>
    %c6 = arith.constant 6 : index
    %c0_35 = arith.constant 0 : index
    %c0_36 = arith.constant 0 : index
    %51 = vector.load %arg3[%c6, %c0_35, %c0_36] : memref<9x1x256xf32, #tpu.memory_space<vmem>>, vector<1x1x256xf32>
    %52 = vector.shape_cast %51 : vector<1x1x256xf32> to vector<1x256xf32>
    %53 = vector.broadcast %52 : vector<1x256xf32> to vector<4x256xf32>
    %54 = arith.mulf %50, %53 : vector<4x256xf32>
    %c6_37 = arith.constant 6 : index
    %c0_38 = arith.constant 0 : index
    %c0_39 = arith.constant 0 : index
    %55 = vector.load %arg2[%c6_37, %c0_38, %c0_39] : memref<9x4x4xf32, #tpu.memory_space<vmem>>, vector<1x4x4xf32>
    %56 = vector.shape_cast %55 : vector<1x4x4xf32> to vector<4x4xf32>
    %cst_40 = arith.constant dense<0.000000e+00> : vector<4x256xf32>
    %57 = tpu.matmul %56, %54, %cst_40 {dimension_numbers = #tpu.dot_dimension_numbers<[1], [0], [0], [1], [0, 0, 1, 1], [], []>} : vector<4x4xf32>, vector<4x256xf32>, vector<4x256xf32> -> vector<4x256xf32>
    %58 = arith.addf %49, %57 : vector<4x256xf32>
    %c240_i32 = arith.constant 240 : i32
    %59 = tpu.dynamic_rotate %1 by %c240_i32 dim 1 : vector<4x256xf32>, i32 -> vector<4x256xf32>
    %c7 = arith.constant 7 : index
    %c0_41 = arith.constant 0 : index
    %c0_42 = arith.constant 0 : index
    %60 = vector.load %arg3[%c7, %c0_41, %c0_42] : memref<9x1x256xf32, #tpu.memory_space<vmem>>, vector<1x1x256xf32>
    %61 = vector.shape_cast %60 : vector<1x1x256xf32> to vector<1x256xf32>
    %62 = vector.broadcast %61 : vector<1x256xf32> to vector<4x256xf32>
    %63 = arith.mulf %59, %62 : vector<4x256xf32>
    %c7_43 = arith.constant 7 : index
    %c0_44 = arith.constant 0 : index
    %c0_45 = arith.constant 0 : index
    %64 = vector.load %arg2[%c7_43, %c0_44, %c0_45] : memref<9x4x4xf32, #tpu.memory_space<vmem>>, vector<1x4x4xf32>
    %65 = vector.shape_cast %64 : vector<1x4x4xf32> to vector<4x4xf32>
    %cst_46 = arith.constant dense<0.000000e+00> : vector<4x256xf32>
    %66 = tpu.matmul %65, %63, %cst_46 {dimension_numbers = #tpu.dot_dimension_numbers<[1], [0], [0], [1], [0, 0, 1, 1], [], []>} : vector<4x4xf32>, vector<4x256xf32>, vector<4x256xf32> -> vector<4x256xf32>
    %67 = arith.addf %58, %66 : vector<4x256xf32>
    %c239_i32 = arith.constant 239 : i32
    %68 = tpu.dynamic_rotate %1 by %c239_i32 dim 1 : vector<4x256xf32>, i32 -> vector<4x256xf32>
    %c8 = arith.constant 8 : index
    %c0_47 = arith.constant 0 : index
    %c0_48 = arith.constant 0 : index
    %69 = vector.load %arg3[%c8, %c0_47, %c0_48] : memref<9x1x256xf32, #tpu.memory_space<vmem>>, vector<1x1x256xf32>
    %70 = vector.shape_cast %69 : vector<1x1x256xf32> to vector<1x256xf32>
    %71 = vector.broadcast %70 : vector<1x256xf32> to vector<4x256xf32>
    %72 = arith.mulf %68, %71 : vector<4x256xf32>
    %c8_49 = arith.constant 8 : index
    %c0_50 = arith.constant 0 : index
    %c0_51 = arith.constant 0 : index
    %73 = vector.load %arg2[%c8_49, %c0_50, %c0_51] : memref<9x4x4xf32, #tpu.memory_space<vmem>>, vector<1x4x4xf32>
    %74 = vector.shape_cast %73 : vector<1x4x4xf32> to vector<4x4xf32>
    %cst_52 = arith.constant dense<0.000000e+00> : vector<4x256xf32>
    %75 = tpu.matmul %74, %72, %cst_52 {dimension_numbers = #tpu.dot_dimension_numbers<[1], [0], [0], [1], [0, 0, 1, 1], [], []>} : vector<4x4xf32>, vector<4x256xf32>, vector<4x256xf32> -> vector<4x256xf32>
    %76 = arith.addf %67, %75 : vector<4x256xf32>
    %c0_53 = arith.constant 0 : index
    %c0_54 = arith.constant 0 : index
    %c0_55 = arith.constant 0 : index
    %77 = vector.load %arg4[%c0_53, %c0_54, %c0_55] : memref<1x4x256xf32, #tpu.memory_space<vmem>>, vector<1x4x256xf32>
    %78 = vector.shape_cast %77 : vector<1x4x256xf32> to vector<4x256xf32>
    %79 = vector.shape_cast %76 : vector<4x256xf32> to vector<1x4x256xf32>
    tpu.vector_store %arg4[%c0_53, %c0_54, %c0_55], %79 {strides = array<i32>} : memref<1x4x256xf32, #tpu.memory_space<vmem>>, vector<1x4x256xf32>,
    %cst_56 = arith.constant dense<0.000000e+00> : vector<4xf32>
    %80 = vector.multi_reduction <add>, %76, %cst_56 [1] : vector<4x256xf32> to vector<4xf32>
    %81 = vector.shape_cast %80 : vector<4xf32> to vector<4x1xf32>
    %82 = arith.mulf %76, %76 : vector<4x256xf32>
    %cst_57 = arith.constant dense<0.000000e+00> : vector<4xf32>
    %83 = vector.multi_reduction <add>, %82, %cst_57 [1] : vector<4x256xf32> to vector<4xf32>
    %84 = vector.shape_cast %83 : vector<4xf32> to vector<4x1xf32>
    %85 = tpu.concatenate %81, %84 in 1 : vector<4x1xf32>, vector<4x1xf32> -> vector<4x2xf32>
    %c0_58 = arith.constant 0 : index
    %c0_59 = arith.constant 0 : index
    %c0_60 = arith.constant 0 : index
    %86 = vector.load %arg5[%c0_58, %c0_59, %c0_60] : memref<1x4x2xf32, #tpu.memory_space<vmem>>, vector<1x4x2xf32>
    %87 = vector.shape_cast %86 : vector<1x4x2xf32> to vector<4x2xf32>
    %88 = vector.shape_cast %85 : vector<4x2xf32> to vector<1x4x2xf32>
    tpu.vector_store %arg5[%c0_58, %c0_59, %c0_60], %88 {strides = array<i32>} : memref<1x4x2xf32, #tpu.memory_space<vmem>>, vector<1x4x2xf32>,
    return
  }
  func.func @transform_0(%arg0: i32) -> (i32, i32, i32) {
    %c0_i32 = arith.constant 0 : i32
    %c0_i32_0 = arith.constant 0 : i32
    %c0_i32_1 = arith.constant 0 : i32
    return %arg0, %c0_i32, %c0_i32_0 : i32, i32, i32
  }
  func.func @transform_1(%arg0: i32) -> (i32, i32, i32) {
    %c0_i32 = arith.constant 0 : i32
    %c0_i32_0 = arith.constant 0 : i32
    %c0_i32_1 = arith.constant 0 : i32
    %c0_i32_2 = arith.constant 0 : i32
    return %c0_i32, %c0_i32_0, %c0_i32_1 : i32, i32, i32
  }
  func.func @transform_2(%arg0: i32) -> (i32, i32, i32) {
    %c0_i32 = arith.constant 0 : i32
    %c0_i32_0 = arith.constant 0 : i32
    %c0_i32_1 = arith.constant 0 : i32
    %c0_i32_2 = arith.constant 0 : i32
    return %c0_i32, %c0_i32_0, %c0_i32_1 : i32, i32, i32
  }
  func.func @transform_3(%arg0: i32) -> (i32, i32, i32) {
    %c0_i32 = arith.constant 0 : i32
    %c0_i32_0 = arith.constant 0 : i32
    %c0_i32_1 = arith.constant 0 : i32
    return %arg0, %c0_i32, %c0_i32_0 : i32, i32, i32
  }
  func.func @transform_4(%arg0: i32) -> (i32, i32, i32) {
    %c0_i32 = arith.constant 0 : i32
    %c0_i32_0 = arith.constant 0 : i32
    %c0_i32_1 = arith.constant 0 : i32
    return %arg0, %c0_i32, %c0_i32_0 : i32, i32, i32
  }
}

</mosaic_0001>

<llo_original>
// kernel: tpu_custom_call.1
$region0: #{tpu_custom_call.1}
  #allocation0 [shape = 'u32[]', space=smem, size = 0x4, offset = 0x4, fixed_abs, tag = 'smem constant byte address 0x4 - core index']
  #allocation1 [shape = 'u32[144,128]{1,0:T(1,128)}', space=vmem, size = 0x12000, scoped, tag = 'internal scratch']
  %s0 = inlined_call_operand.vmem [shape: f32[2,4,256], index: 0, kind: input, shape index: {}]
  %s1 = inlined_call_operand.vmem [shape: f32[9,4,4], index: 1, kind: input, shape index: {}]
  %s2 = inlined_call_operand.vmem [shape: f32[9,1,256], index: 2, kind: input, shape index: {}]
  %s3 = inlined_call_operand.hbm [shape: f32[2,4,256], index: 3, kind: output, shape index: {0}]
  %s4 = inlined_call_operand.vmem [shape: f32[2,4,2], index: 4, kind: output, shape index: {1}]
  %5 = xla_tuple %s3, %s4
  %s6 = sld [smem:[#allocation0]]
  $region53: #{tpu_custom_call.1} parent=0
    _
  %s8 = ssub.s32 1, %s6
  %s9 = scalar_select 0, %s8, %s6
  $region1: #{tpu_custom_call.1} parent=0
    #allocation2 [shape = 'u8[8192]{0}', space=vmem, size = 0x2000, scoped, tag = 'output window, operand 0']
    #allocation3 [shape = 's32[2]{0}', space=sflag, size = 0x8, scoped, tag = 'scoped memory for tpu_custom_call.1']
    %10 = vsyncpa [#allocation3], 0
    %s11 = scalar_lea.sflag [#allocation3], 1
    %12 = vsyncpa %s11, 0
    loop: start=0, step=1, limit=4
    $region2: #{tpu_custom_call.1} parent=1 // loop_pre_header
      _
    $region3: #{tpu_custom_call.1} parent=1 // loop_header
      %s14 = sphi 0, %s18
      %p15 = scmp.ge.s32.totalorder %s14, 4
      %s24 = sphi 0, %s26
      %s27 = sphi 0, %s24
      %s28 = sphi 0, %s27
      %s44 = sphi 0, %s28
      %s48 = sphi 0, %s48
      %s50 = sphi 0, %s48
      %s51 = sphi 0, %s50
      %s65 = sphi 0, %s51
      %s69 = sphi 0, %s69
      %s71 = sphi 0, %s69
      %s72 = sphi 0, %s71
      %s86 = sphi 0, %s72
      %s92 = sphi 0, %s94
      %s95 = sphi 0, %s92
      %s96 = sphi 0, %s95
      %s112 = sphi 0, %s96
      %s118 = sphi 0, %s120
      %s121 = sphi 0, %s118
      %s122 = sphi 0, %s121
      %s138 = sphi 0, %s122
    $region4: #{tpu_custom_call.1} parent=1 // loop_header_branch
      %17 = sbr.rel (%p15) target = $region8
    $region5: #{tpu_custom_call.1} parent=1 // loop_body
      %s19 = ssub.s32 %s14, 1
      %s20 = ssub.s32 %s14, 2
      %s21 = sadd.s32 %s14, 1
      %s22 = ssub.s32 %s14, %s21
      %p23 = scmp.eq.s32.totalorder %s22, 0
      %s25 = sadd.s32 %s24, 1
      %s26 = scalar_select %p23, %s24, %s25
      %p29 = pneg %p23
      %p30 = scmp.eq.s32.totalorder %s14, 1
      %p31 = por %p29, %p30
      %p32 = scmp.ne.s32.totalorder %s24, %s27
      %p33 = scmp.eq.s32.totalorder %s14, 0
      %p34 = por %p32, %p33
      %p35 = scmp.ne.s32.totalorder %s24, %s27
      %p36 = scmp.eq.s32.totalorder %s19, 1
      %p37 = por %p35, %p36
      %p38 = scmp.ne.s32.totalorder %s27, %s28
      %p39 = scmp.eq.s32.totalorder %s19, 0
      %p40 = por %p38, %p39
      %p41 = scmp.ne.s32.totalorder %s27, %s28
      %p42 = scmp.eq.s32.totalorder %s20, 1
      %p43 = por %p41, %p42
      %p45 = scmp.ne.s32.totalorder %s28, %s44
      %p46 = scmp.eq.s32.totalorder %s20, 0
      %p47 = por %p45, %p46
      %s49 = sadd.s32 %s48, 1
      %p52 = scmp.eq.s32.totalorder %s14, 1
      %p53 = scmp.ne.s32.totalorder %s48, %s50
      %p54 = scmp.eq.s32.totalorder %s14, 0
      %p55 = por %p53, %p54
      %p56 = scmp.ne.s32.totalorder %s48, %s50
      %p57 = scmp.eq.s32.totalorder %s19, 1
      %p58 = por %p56, %p57
      %p59 = scmp.ne.s32.totalorder %s50, %s51
      %p60 = scmp.eq.s32.totalorder %s19, 0
      %p61 = por %p59, %p60
      %p62 = scmp.ne.s32.totalorder %s50, %s51
      %p63 = scmp.eq.s32.totalorder %s20, 1
      %p64 = por %p62, %p63
      %p66 = scmp.ne.s32.totalorder %s51, %s65
      %p67 = scmp.eq.s32.totalorder %s20, 0
      %p68 = por %p66, %p67
      %s70 = sadd.s32 %s69, 1
      %p73 = scmp.eq.s32.totalorder %s14, 1
      %p74 = scmp.ne.s32.totalorder %s69, %s71
      %p75 = scmp.eq.s32.totalorder %s14, 0
      %p76 = por %p74, %p75
      %p77 = scmp.ne.s32.totalorder %s69, %s71
      %p78 = scmp.eq.s32.totalorder %s19, 1
      %p79 = por %p77, %p78
      %p80 = scmp.ne.s32.totalorder %s71, %s72
      %p81 = scmp.eq.s32.totalorder %s19, 0
      %p82 = por %p80, %p81
      %p83 = scmp.ne.s32.totalorder %s71, %s72
      %p84 = scmp.eq.s32.totalorder %s20, 1
      %p85 = por %p83, %p84
      %p87 = scmp.ne.s32.totalorder %s72, %s86
      %p88 = scmp.eq.s32.totalorder %s20, 0
      %p89 = por %p87, %p88
      %s90 = ssub.s32 %s14, %s21
      %p91 = scmp.eq.s32.totalorder %s90, 0
      %s93 = sadd.s32 %s92, 1
      %s94 = scalar_select %p91, %s92, %s93
      %p97 = pneg %p91
      %p98 = scmp.eq.s32.totalorder %s14, 1
      %p99 = por %p97, %p98
      %p100 = scmp.ne.s32.totalorder %s92, %s95
      %p101 = scmp.eq.s32.totalorder %s14, 0
      %p102 = por %p100, %p101
      %p103 = scmp.ne.s32.totalorder %s92, %s95
      %p104 = scmp.eq.s32.totalorder %s19, 1
      %p105 = por %p103, %p104
      %p106 = scmp.ne.s32.totalorder %s95, %s96
      %p107 = scmp.eq.s32.totalorder %s19, 0
      %p108 = por %p106, %p107
      %p109 = scmp.ne.s32.totalorder %s95, %s96
      %p110 = scmp.eq.s32.totalorder %s20, 1
      %p111 = por %p109, %p110
      %p113 = scmp.ne.s32.totalorder %s96, %s112
      %p114 = scmp.eq.s32.totalorder %s20, 0
      %p115 = por %p113, %p114
      %s116 = ssub.s32 %s14, %s21
      %p117 = scmp.eq.s32.totalorder %s116, 0
      %s119 = sadd.s32 %s118, 1
      %s120 = scalar_select %p117, %s118, %s119
      %p123 = pneg %p117
      %p124 = scmp.eq.s32.totalorder %s14, 1
      %p125 = por %p123, %p124
      %p126 = scmp.ne.s32.totalorder %s118, %s121
      %p127 = scmp.eq.s32.totalorder %s14, 0
      %p128 = por %p126, %p127
      %p129 = scmp.ne.s32.totalorder %s118, %s121
      %p130 = scmp.eq.s32.totalorder %s19, 1
      %p131 = por %p129, %p130
      %p132 = scmp.ne.s32.totalorder %s121, %s122
      %p133 = scmp.eq.s32.totalorder %s19, 0
      %p134 = por %p132, %p133
      %p135 = scmp.ne.s32.totalorder %s121, %s122
      %p136 = scmp.eq.s32.totalorder %s20, 1
      %p137 = por %p135, %p136
      %p139 = scmp.ne.s32.totalorder %s122, %s138
      %p140 = scmp.eq.s32.totalorder %s20, 0
      %p141 = por %p139, %p140
      %p142 = scmp.le.s32.totalorder 1, %s14
      %p143 = scmp.lt.s32.totalorder %s14, 3
      %p144 = pnand %p142, %p143
      %p145 = pneg %p144
      // Predicated region
      $region9: #{tpu_custom_call.1} parent=5 // pred_check
        _
      $region10: #{tpu_custom_call.1} parent=5 // pred_check_branch
        %147 = sbr.rel (%p144) target = $region12
      $region11: #{tpu_custom_call.1} parent=5 // pred_region
        %s148 = ssub.s32 %s14, 1
        // Predicated region
        $region13: #{tpu_custom_call.1} parent=11 // pred_check
          %p149 = pneg %p61
        $region14: #{tpu_custom_call.1} parent=11 // pred_check_branch
          %151 = sbr.rel (%p149) target = $region16
        $region15: #{tpu_custom_call.1} parent=11 // pred_region
          _
        $region16: #{tpu_custom_call.1} parent=11 // pred_fallthru
          _
        // Predicated region
        $region17: #{tpu_custom_call.1} parent=11 // pred_check
          %p152 = pneg %p82
        $region18: #{tpu_custom_call.1} parent=11 // pred_check_branch
          %154 = sbr.rel (%p152) target = $region20
        $region19: #{tpu_custom_call.1} parent=11 // pred_region
          _
        $region20: #{tpu_custom_call.1} parent=11 // pred_fallthru
          _
      $region12: #{tpu_custom_call.1} parent=5 // pred_fallthru
        _
      %p155 = scmp.lt.s32.totalorder %s14, 2
      // Predicated region
      $region21: #{tpu_custom_call.1} parent=5 // pred_check
        %p156 = pneg %p155
      $region22: #{tpu_custom_call.1} parent=5 // pred_check_branch
        %158 = sbr.rel (%p156) target = $region24
      $region23: #{tpu_custom_call.1} parent=5 // pred_region
        // Predicated region
        $region25: #{tpu_custom_call.1} parent=23 // pred_check
          %p159 = pneg %p34
        $region26: #{tpu_custom_call.1} parent=23 // pred_check_branch
          %161 = sbr.rel (%p159) target = $region28
        $region27: #{tpu_custom_call.1} parent=23 // pred_region
          %p162 = scmp.lt.s32.totalorder %s14, 1
          %s163 = scalar_select %p162, %s14, 1
          %s164 = smul.addr %s163, 2
          %s165 = smul.addr %s164, 4
          %s166 = scalar_lea.vmem %s0, %s165
        $region28: #{tpu_custom_call.1} parent=23 // pred_fallthru
          _
      $region24: #{tpu_custom_call.1} parent=5 // pred_fallthru
        _
      %p167 = scmp.le.s32.totalorder 1, %s14
      %p168 = scmp.lt.s32.totalorder %s14, 3
      %p169 = pnand %p167, %p168
      %p170 = pneg %p169
      // Predicated region
      $region29: #{tpu_custom_call.1} parent=5 // pred_check
        _
      $region30: #{tpu_custom_call.1} parent=5 // pred_check_branch
        %172 = sbr.rel (%p169) target = $region32
      $region31: #{tpu_custom_call.1} parent=5 // pred_region
        %s173 = ssub.s32 %s14, 1
        %p174 = scmp.lt.s32.totalorder %s19, 1
        %s175 = scalar_select %p174, %s19, 1
        %s176 = smul.addr %s175, 2
        %s177 = smul.addr %s176, 4
        %s178 = scalar_lea.vmem %s0, %s177
        %p179 = pneg %p40
        %p180 = pneg %p37
        %p181 = pneg %p61
        %p182 = pneg %p58
        %p183 = pneg %p82
        %p184 = pneg %p79
        %p185 = pneg %p108
        %p186 = pneg %p105
        %s187 = sand.u32 %s95, 1
        %s188 = scalar_lea.sflag [#allocation3], %s187
        %s189 = sand.u32 %s95, 1
        %s190 = smul.addr %s189, 8
        %s191 = scalar_lea.vmem [#allocation2], %s190
        %p192 = pneg %p134
        %p193 = pneg %p131
        %p194 = scmp.lt.s32.totalorder %s19, 1
        %s195 = scalar_select %p194, %s19, 1
        %s196 = smul.addr %s195, 4
        %s197 = scalar_lea.vmem %s4, %s196
        %p198 = scmp.lt.s32.totalorder %s19, 1
        %s199 = scalar_select %p198, %s19, 1
        %s200 = smul.addr %s199, 2
        %s201 = smul.addr %s200, 4
        %s202 = scalar_lea.vmem %s0, %s201
        %p203 = scmp.lt.s32.totalorder %s19, 1
        %s204 = scalar_select %p203, %s19, 1
        %s205 = smul.addr %s204, 4
        %s206 = scalar_lea.vmem %s4, %s205
        %v207 = vld [vmem:[%s202] sm:$0xff]
        %v209 = vcombine.high %v207, %v207
        %211 = vrot.lane.b32.xlu0 %v207, 17
        %v212 = vpop.permute.xlu0 %211
        %213 = vrot.lane.b32.xlu0 %v209, 17
        %v214 = vpop.permute.xlu0 %213
        %v215 = vlaneseq
        %v216 = vand.u32 %v215, 127
        %vm217 = vcmp.lt.s32.totalorder %v216, 17
        %v218 = vsel %vm217, %v212, %v214
        %v219 = vsel %vm217, %v214, %v212
        %v220 = vld [vmem:[%s2] sm:$0x3]
        %v222 = vlaneseq
        %v223 = vshrl.u32 %v222, 7
        %v224 = vsub.s32 0, %v223
        %v225 = vrot.slane %v220, %v224
        %v226 = vlaneseq
        %v227 = vshrl.u32 %v226, 7
        %v228 = vsub.s32 1, %v227
        %v229 = vrot.slane %v220, %v228
        %v232 = vmul.f32 %v219, %v225
        %v233 = vmul.f32 %v218, %v229
        %v234 = vld [vmem:[%s1] sm:$0xf]
        %235 = vrot.lane.b32.xlu0 %v207, 16
        %v236 = vpop.permute.xlu0 %235
        %237 = vrot.lane.b32.xlu0 %v209, 16
        %v238 = vpop.permute.xlu0 %237
        %vm239 = vcmp.lt.s32.totalorder %v216, 16
        %v240 = vsel %vm239, %v236, %v238
        %v241 = vsel %vm239, %v238, %v236
        %s242 = scalar_lea.vmem %s2, 2
        %v243 = vld [vmem:[%s242] sm:$0x3]
        %v245 = vlaneseq
        %v246 = vshrl.u32 %v245, 7
        %v247 = vsub.s32 0, %v246
        %v248 = vrot.slane %v243, %v247
        %v249 = vlaneseq
        %v250 = vshrl.u32 %v249, 7
        %v251 = vsub.s32 1, %v250
        %v252 = vrot.slane %v243, %v251
        %v255 = vmul.f32 %v241, %v248
        %v256 = vmul.f32 %v240, %v252
        %s257 = scalar_lea.vmem %s1, 4
        %v258 = vld [vmem:[%s257] sm:$0xf]
        %vm259 = vcmask 31744
        %v261 = vsel %vm259, %v258, 0
        %vm263 = vcmask 1043456
        %v265 = vsel %vm263, %v255, 0
        %v268 = vsel %vm263, %v256, 0
        %270 = vmatprep.subr.mxu0 0.0
        %271 = vmatpush1.msra.mxu0 0.0
        %272 = vmatprep.subr.mxu0 0.0
        %273 = vmatpush1.msra.mxu0 0.0
        %274 = vmatprep.subr.mxu0 0.0
        %275 = vmatpush1.msra.mxu0 0.0
        %276 = vmatprep.subr.mxu0 0.0
        %277 = vmatpush1.msra.mxu0 0.0
        %278 = vmatprep.subr.mxu0 0.0
        %279 = vmatpush1.msra.mxu0 0.0
        %280 = vmatprep.subr.mxu0 0.0
        %281 = vmatpush1.msra.mxu0 0.0
        %282 = vmatprep.subr.mxu0 0.0
        %283 = vmatpush1.msra.mxu0 0.0
        %284 = vmatprep.subr.mxu0 0.0
        %285 = vmatpush1.msra.mxu0 0.0
        %286 = vmatprep.subr.mxu0 0.0
        %287 = vmatpush1.msra.mxu0 0.0
        %288 = vmatprep.subr.mxu0 0.0
        %289 = vmatpush1.msra.mxu0 0.0
        %290 = vmatprep.subr.mxu0 0.0
        %291 = vmatpush1.msra.mxu0 0.0
        %292 = vmatprep.subr.mxu0 0.0
        %293 = vmatpush1.msra.mxu0 0.0
        %294 = vmatprep.subr.mxu0 0.0
        %295 = vmatpush1.msra.mxu0 0.0
        %296 = vmatprep.subr.mxu0 0.0
        %297 = vmatpush1.msra.mxu0 0.0
        %298 = vmatprep.subr.mxu0 0.0
        %299 = vmatpush1.msra.mxu0 0.0
        %300 = vmatprep.subr.mxu0 %v268
        %301 = vmatpush1.msra.mxu0 %v265
        %302 = vmatprep.subr.mxu0 0.0
        %303 = vmatpush2.msra.mxu0 0.0
        %304 = vmatprep.subr.mxu0 0.0
        %305 = vmatpush2.msra.mxu0 0.0
        %306 = vmatprep.subr.mxu0 0.0
        %307 = vmatpush2.msra.mxu0 0.0
        %308 = vmatprep.subr.mxu0 0.0
        %309 = vmatpush2.msra.mxu0 0.0
        %310 = vmatprep.subr.mxu0 0.0
        %311 = vmatpush2.msra.mxu0 0.0
        %312 = vmatprep.subr.mxu0 0.0
        %313 = vmatpush2.msra.mxu0 0.0
        %314 = vmatprep.subr.mxu0 0.0
        %315 = vmatpush2.msra.mxu0 0.0
        %316 = vmatprep.subr.mxu0 0.0
        %317 = vmatpush2.msra.mxu0 0.0
        %318 = vmatprep.subr.mxu0 0.0
        %319 = vmatpush2.msra.mxu0 0.0
        %320 = vmatprep.subr.mxu0 0.0
        %321 = vmatpush2.msra.mxu0 0.0
        %322 = vmatprep.subr.mxu0 0.0
        %323 = vmatpush2.msra.mxu0 0.0
        %324 = vmatprep.subr.mxu0 0.0
        %325 = vmatpush2.msra.mxu0 0.0
        %326 = vmatprep.subr.mxu0 0.0
        %327 = vmatpush2.msra.mxu0 0.0
        %328 = vmatprep.subr.mxu0 0.0
        %329 = vmatpush2.msra.mxu0 0.0
        %330 = vmatprep.subr.mxu0 0.0
        %331 = vmatpush2.msra.mxu0 0.0
        %332 = vmatprep.subr.mxu0 0.0
        %333 = vmatpush2.msra.mxu0 0.0
        %334 = vmatprep.mubr.f32.mxu0 0.0
        %335 = vmatmul.mubr.f32.gmra.mxu0 %v261
        %v336 = vpop.f32.mrf.mxu0
        %v337 = vadd.f32 0.0, %v336
        %v338 = vpop.f32.mrf.mxu0
        %v339 = vadd.f32 0.0, %v338
        %340 = vdwg.mxu0
        %v342 = vsel %vm259, %v234, 0
        %v345 = vsel %vm263, %v232, 0
        %v348 = vsel %vm263, %v233, 0
        %350 = vmatprep.subr.mxu0 0.0
        %351 = vmatpush1.msra.mxu0 0.0
        %352 = vmatprep.subr.mxu0 0.0
        %353 = vmatpush1.msra.mxu0 0.0
        %354 = vmatprep.subr.mxu0 0.0
        %355 = vmatpush1.msra.mxu0 0.0
        %356 = vmatprep.subr.mxu0 0.0
        %357 = vmatpush1.msra.mxu0 0.0
        %358 = vmatprep.subr.mxu0 0.0
        %359 = vmatpush1.msra.mxu0 0.0
        %360 = vmatprep.subr.mxu0 0.0
        %361 = vmatpush1.msra.mxu0 0.0
        %362 = vmatprep.subr.mxu0 0.0
        %363 = vmatpush1.msra.mxu0 0.0
        %364 = vmatprep.subr.mxu0 0.0
        %365 = vmatpush1.msra.mxu0 0.0
        %366 = vmatprep.subr.mxu0 0.0
        %367 = vmatpush1.msra.mxu0 0.0
        %368 = vmatprep.subr.mxu0 0.0
        %369 = vmatpush1.msra.mxu0 0.0
        %370 = vmatprep.subr.mxu0 0.0
        %371 = vmatpush1.msra.mxu0 0.0
        %372 = vmatprep.subr.mxu0 0.0
        %373 = vmatpush1.msra.mxu0 0.0
        %374 = vmatprep.subr.mxu0 0.0
        %375 = vmatpush1.msra.mxu0 0.0
        %376 = vmatprep.subr.mxu0 0.0
        %377 = vmatpush1.msra.mxu0 0.0
        %378 = vmatprep.subr.mxu0 0.0
        %379 = vmatpush1.msra.mxu0 0.0
        %380 = vmatprep.subr.mxu0 %v348
        %381 = vmatpush1.msra.mxu0 %v345
        %382 = vmatprep.subr.mxu0 0.0
        %383 = vmatpush2.msra.mxu0 0.0
        %384 = vmatprep.subr.mxu0 0.0
        %385 = vmatpush2.msra.mxu0 0.0
        %386 = vmatprep.subr.mxu0 0.0
        %387 = vmatpush2.msra.mxu0 0.0
        %388 = vmatprep.subr.mxu0 0.0
        %389 = vmatpush2.msra.mxu0 0.0
        %390 = vmatprep.subr.mxu0 0.0
        %391 = vmatpush2.msra.mxu0 0.0
        %392 = vmatprep.subr.mxu0 0.0
        %393 = vmatpush2.msra.mxu0 0.0
        %394 = vmatprep.subr.mxu0 0.0
        %395 = vmatpush2.msra.mxu0 0.0
        %396 = vmatprep.subr.mxu0 0.0
        %397 = vmatpush2.msra.mxu0 0.0
        %398 = vmatprep.subr.mxu0 0.0
        %399 = vmatpush2.msra.mxu0 0.0
        %400 = vmatprep.subr.mxu0 0.0
        %401 = vmatpush2.msra.mxu0 0.0
        %402 = vmatprep.subr.mxu0 0.0
        %403 = vmatpush2.msra.mxu0 0.0
        %404 = vmatprep.subr.mxu0 0.0
        %405 = vmatpush2.msra.mxu0 0.0
        %406 = vmatprep.subr.mxu0 0.0
        %407 = vmatpush2.msra.mxu0 0.0
        %408 = vmatprep.subr.mxu0 0.0
        %409 = vmatpush2.msra.mxu0 0.0
        %410 = vmatprep.subr.mxu0 0.0
        %411 = vmatpush2.msra.mxu0 0.0
        %412 = vmatprep.subr.mxu0 0.0
        %413 = vmatpush2.msra.mxu0 0.0
        %414 = vmatprep.mubr.f32.mxu0 0.0
        %415 = vmatmul.mubr.f32.gmra.mxu0 %v342
        %v416 = vpop.f32.mrf.mxu0
        %v417 = vadd.f32 %v337, %v416
        %v418 = vpop.f32.mrf.mxu0
        %v419 = vadd.f32 %v339, %v418
        %420 = vdwg.mxu0
        %421 = vrot.lane.b32.xlu0 %v207, 15
        %v422 = vpop.permute.xlu0 %421
        %423 = vrot.lane.b32.xlu0 %v209, 15
        %v424 = vpop.permute.xlu0 %423
        %vm425 = vcmp.lt.s32.totalorder %v216, 15
        %v426 = vsel %vm425, %v422, %v424
        %v427 = vsel %vm425, %v424, %v422
        %s428 = scalar_lea.vmem %s2, 4
        %v429 = vld [vmem:[%s428] sm:$0x3]
        %v431 = vlaneseq
        %v432 = vshrl.u32 %v431, 7
        %v433 = vsub.s32 0, %v432
        %v434 = vrot.slane %v429, %v433
        %v435 = vlaneseq
        %v436 = vshrl.u32 %v435, 7
        %v437 = vsub.s32 1, %v436
        %v438 = vrot.slane %v429, %v437
        %v441 = vmul.f32 %v427, %v434
        %v442 = vmul.f32 %v426, %v438
        %s443 = scalar_lea.vmem %s1, 8
        %v444 = vld [vmem:[%s443] sm:$0xf]
        %v446 = vsel %vm259, %v444, 0
        %v449 = vsel %vm263, %v441, 0
        %v452 = vsel %vm263, %v442, 0
        %454 = vmatprep.subr.mxu0 0.0
        %455 = vmatpush1.msra.mxu0 0.0
        %456 = vmatprep.subr.mxu0 0.0
        %457 = vmatpush1.msra.mxu0 0.0
        %458 = vmatprep.subr.mxu0 0.0
        %459 = vmatpush1.msra.mxu0 0.0
        %460 = vmatprep.subr.mxu0 0.0
        %461 = vmatpush1.msra.mxu0 0.0
        %462 = vmatprep.subr.mxu0 0.0
        %463 = vmatpush1.msra.mxu0 0.0
        %464 = vmatprep.subr.mxu0 0.0
        %465 = vmatpush1.msra.mxu0 0.0
        %466 = vmatprep.subr.mxu0 0.0
        %467 = vmatpush1.msra.mxu0 0.0
        %468 = vmatprep.subr.mxu0 0.0
        %469 = vmatpush1.msra.mxu0 0.0
        %470 = vmatprep.subr.mxu0 0.0
        %471 = vmatpush1.msra.mxu0 0.0
        %472 = vmatprep.subr.mxu0 0.0
        %473 = vmatpush1.msra.mxu0 0.0
        %474 = vmatprep.subr.mxu0 0.0
        %475 = vmatpush1.msra.mxu0 0.0
        %476 = vmatprep.subr.mxu0 0.0
        %477 = vmatpush1.msra.mxu0 0.0
        %478 = vmatprep.subr.mxu0 0.0
        %479 = vmatpush1.msra.mxu0 0.0
        %480 = vmatprep.subr.mxu0 0.0
        %481 = vmatpush1.msra.mxu0 0.0
        %482 = vmatprep.subr.mxu0 0.0
        %483 = vmatpush1.msra.mxu0 0.0
        %484 = vmatprep.subr.mxu0 %v452
        %485 = vmatpush1.msra.mxu0 %v449
        %486 = vmatprep.subr.mxu0 0.0
        %487 = vmatpush2.msra.mxu0 0.0
        %488 = vmatprep.subr.mxu0 0.0
        %489 = vmatpush2.msra.mxu0 0.0
        %490 = vmatprep.subr.mxu0 0.0
        %491 = vmatpush2.msra.mxu0 0.0
        %492 = vmatprep.subr.mxu0 0.0
        %493 = vmatpush2.msra.mxu0 0.0
        %494 = vmatprep.subr.mxu0 0.0
        %495 = vmatpush2.msra.mxu0 0.0
        %496 = vmatprep.subr.mxu0 0.0
        %497 = vmatpush2.msra.mxu0 0.0
        %498 = vmatprep.subr.mxu0 0.0
        %499 = vmatpush2.msra.mxu0 0.0
        %500 = vmatprep.subr.mxu0 0.0
        %501 = vmatpush2.msra.mxu0 0.0
        %502 = vmatprep.subr.mxu0 0.0
        %503 = vmatpush2.msra.mxu0 0.0
        %504 = vmatprep.subr.mxu0 0.0
        %505 = vmatpush2.msra.mxu0 0.0
        %506 = vmatprep.subr.mxu0 0.0
        %507 = vmatpush2.msra.mxu0 0.0
        %508 = vmatprep.subr.mxu0 0.0
        %509 = vmatpush2.msra.mxu0 0.0
        %510 = vmatprep.subr.mxu0 0.0
        %511 = vmatpush2.msra.mxu0 0.0
        %512 = vmatprep.subr.mxu0 0.0
        %513 = vmatpush2.msra.mxu0 0.0
        %514 = vmatprep.subr.mxu0 0.0
        %515 = vmatpush2.msra.mxu0 0.0
        %516 = vmatprep.subr.mxu0 0.0
        %517 = vmatpush2.msra.mxu0 0.0
        %518 = vmatprep.mubr.f32.mxu0 0.0
        %519 = vmatmul.mubr.f32.gmra.mxu0 %v446
        %v520 = vpop.f32.mrf.mxu0
        %v521 = vadd.f32 0.0, %v520
        %v522 = vpop.f32.mrf.mxu0
        %v523 = vadd.f32 0.0, %v522
        %524 = vdwg.mxu0
        %v525 = vadd.f32 %v417, %v521
        %v526 = vadd.f32 %v419, %v523
        %527 = vrot.lane.b32.xlu0 %v207, 1
        %v528 = vpop.permute.xlu0 %527
        %529 = vrot.lane.b32.xlu0 %v209, 1
        %v530 = vpop.permute.xlu0 %529
        %vm531 = vcmp.lt.s32.totalorder %v216, 1
        %v532 = vsel %vm531, %v528, %v530
        %v533 = vsel %vm531, %v530, %v528
        %s534 = scalar_lea.vmem %s2, 6
        %v535 = vld [vmem:[%s534] sm:$0x3]
        %v537 = vlaneseq
        %v538 = vshrl.u32 %v537, 7
        %v539 = vsub.s32 0, %v538
        %v540 = vrot.slane %v535, %v539
        %v541 = vlaneseq
        %v542 = vshrl.u32 %v541, 7
        %v543 = vsub.s32 1, %v542
        %v544 = vrot.slane %v535, %v543
        %v547 = vmul.f32 %v533, %v540
        %v548 = vmul.f32 %v532, %v544
        %s549 = scalar_lea.vmem %s1, 12
        %v550 = vld [vmem:[%s549] sm:$0xf]
        %v552 = vsel %vm259, %v550, 0
        %v555 = vsel %vm263, %v547, 0
        %v558 = vsel %vm263, %v548, 0
        %560 = vmatprep.subr.mxu0 0.0
        %561 = vmatpush1.msra.mxu0 0.0
        %562 = vmatprep.subr.mxu0 0.0
        %563 = vmatpush1.msra.mxu0 0.0
        %564 = vmatprep.subr.mxu0 0.0
        %565 = vmatpush1.msra.mxu0 0.0
        %566 = vmatprep.subr.mxu0 0.0
        %567 = vmatpush1.msra.mxu0 0.0
        %568 = vmatprep.subr.mxu0 0.0
        %569 = vmatpush1.msra.mxu0 0.0
        %570 = vmatprep.subr.mxu0 0.0
        %571 = vmatpush1.msra.mxu0 0.0
        %572 = vmatprep.subr.mxu0 0.0
        %573 = vmatpush1.msra.mxu0 0.0
        %574 = vmatprep.subr.mxu0 0.0
        %575 = vmatpush1.msra.mxu0 0.0
        %576 = vmatprep.subr.mxu0 0.0
        %577 = vmatpush1.msra.mxu0 0.0
        %578 = vmatprep.subr.mxu0 0.0
        %579 = vmatpush1.msra.mxu0 0.0
        %580 = vmatprep.subr.mxu0 0.0
        %581 = vmatpush1.msra.mxu0 0.0
        %582 = vmatprep.subr.mxu0 0.0
        %583 = vmatpush1.msra.mxu0 0.0
        %584 = vmatprep.subr.mxu0 0.0
        %585 = vmatpush1.msra.mxu0 0.0
        %586 = vmatprep.subr.mxu0 0.0
        %587 = vmatpush1.msra.mxu0 0.0
        %588 = vmatprep.subr.mxu0 0.0
        %589 = vmatpush1.msra.mxu0 0.0
        %590 = vmatprep.subr.mxu0 %v558
        %591 = vmatpush1.msra.mxu0 %v555
        %592 = vmatprep.subr.mxu0 0.0
        %593 = vmatpush2.msra.mxu0 0.0
        %594 = vmatprep.subr.mxu0 0.0
        %595 = vmatpush2.msra.mxu0 0.0
        %596 = vmatprep.subr.mxu0 0.0
        %597 = vmatpush2.msra.mxu0 0.0
        %598 = vmatprep.subr.mxu0 0.0
        %599 = vmatpush2.msra.mxu0 0.0
        %600 = vmatprep.subr.mxu0 0.0
        %601 = vmatpush2.msra.mxu0 0.0
        %602 = vmatprep.subr.mxu0 0.0
        %603 = vmatpush2.msra.mxu0 0.0
        %604 = vmatprep.subr.mxu0 0.0
        %605 = vmatpush2.msra.mxu0 0.0
        %606 = vmatprep.subr.mxu0 0.0
        %607 = vmatpush2.msra.mxu0 0.0
        %608 = vmatprep.subr.mxu0 0.0
        %609 = vmatpush2.msra.mxu0 0.0
        %610 = vmatprep.subr.mxu0 0.0
        %611 = vmatpush2.msra.mxu0 0.0
        %612 = vmatprep.subr.mxu0 0.0
        %613 = vmatpush2.msra.mxu0 0.0
        %614 = vmatprep.subr.mxu0 0.0
        %615 = vmatpush2.msra.mxu0 0.0
        %616 = vmatprep.subr.mxu0 0.0
        %617 = vmatpush2.msra.mxu0 0.0
        %618 = vmatprep.subr.mxu0 0.0
        %619 = vmatpush2.msra.mxu0 0.0
        %620 = vmatprep.subr.mxu0 0.0
        %621 = vmatpush2.msra.mxu0 0.0
        %622 = vmatprep.subr.mxu0 0.0
        %623 = vmatpush2.msra.mxu0 0.0
        %624 = vmatprep.mubr.f32.mxu0 0.0
        %625 = vmatmul.mubr.f32.gmra.mxu0 %v552
        %v626 = vpop.f32.mrf.mxu0
        %v627 = vadd.f32 0.0, %v626
        %v628 = vpop.f32.mrf.mxu0
        %v629 = vadd.f32 0.0, %v628
        %630 = vdwg.mxu0
        %v631 = vadd.f32 %v525, %v627
        %v632 = vadd.f32 %v526, %v629
        %s633 = scalar_lea.vmem %s1, 16
        %v634 = vld [vmem:[%s633] sm:$0xf]
        %v636 = vsel %vm259, %v634, 0
        %v638 = vsel %vm263, %v207, 0
        %v640 = vsel %vm263, %v209, 0
        %642 = vmatprep.subr.mxu0 0.0
        %643 = vmatpush1.msra.mxu0 0.0
        %644 = vmatprep.subr.mxu0 0.0
        %645 = vmatpush1.msra.mxu0 0.0
        %646 = vmatprep.subr.mxu0 0.0
        %647 = vmatpush1.msra.mxu0 0.0
        %648 = vmatprep.subr.mxu0 0.0
        %649 = vmatpush1.msra.mxu0 0.0
        %650 = vmatprep.subr.mxu0 0.0
        %651 = vmatpush1.msra.mxu0 0.0
        %652 = vmatprep.subr.mxu0 0.0
        %653 = vmatpush1.msra.mxu0 0.0
        %654 = vmatprep.subr.mxu0 0.0
        %655 = vmatpush1.msra.mxu0 0.0
        %656 = vmatprep.subr.mxu0 0.0
        %657 = vmatpush1.msra.mxu0 0.0
        %658 = vmatprep.subr.mxu0 0.0
        %659 = vmatpush1.msra.mxu0 0.0
        %660 = vmatprep.subr.mxu0 0.0
        %661 = vmatpush1.msra.mxu0 0.0
        %662 = vmatprep.subr.mxu0 0.0
        %663 = vmatpush1.msra.mxu0 0.0
        %664 = vmatprep.subr.mxu0 0.0
        %665 = vmatpush1.msra.mxu0 0.0
        %666 = vmatprep.subr.mxu0 0.0
        %667 = vmatpush1.msra.mxu0 0.0
        %668 = vmatprep.subr.mxu0 0.0
        %669 = vmatpush1.msra.mxu0 0.0
        %670 = vmatprep.subr.mxu0 0.0
        %671 = vmatpush1.msra.mxu0 0.0
        %672 = vmatprep.subr.mxu0 %v640
        %673 = vmatpush1.msra.mxu0 %v638
        %674 = vmatprep.subr.mxu0 0.0
        %675 = vmatpush2.msra.mxu0 0.0
        %676 = vmatprep.subr.mxu0 0.0
        %677 = vmatpush2.msra.mxu0 0.0
        %678 = vmatprep.subr.mxu0 0.0
        %679 = vmatpush2.msra.mxu0 0.0
        %680 = vmatprep.subr.mxu0 0.0
        %681 = vmatpush2.msra.mxu0 0.0
        %682 = vmatprep.subr.mxu0 0.0
        %683 = vmatpush2.msra.mxu0 0.0
        %684 = vmatprep.subr.mxu0 0.0
        %685 = vmatpush2.msra.mxu0 0.0
        %686 = vmatprep.subr.mxu0 0.0
        %687 = vmatpush2.msra.mxu0 0.0
        %688 = vmatprep.subr.mxu0 0.0
        %689 = vmatpush2.msra.mxu0 0.0
        %690 = vmatprep.subr.mxu0 0.0
        %691 = vmatpush2.msra.mxu0 0.0
        %692 = vmatprep.subr.mxu0 0.0
        %693 = vmatpush2.msra.mxu0 0.0
        %694 = vmatprep.subr.mxu0 0.0
        %695 = vmatpush2.msra.mxu0 0.0
        %696 = vmatprep.subr.mxu0 0.0
        %697 = vmatpush2.msra.mxu0 0.0
        %698 = vmatprep.subr.mxu0 0.0
        %699 = vmatpush2.msra.mxu0 0.0
        %700 = vmatprep.subr.mxu0 0.0
        %701 = vmatpush2.msra.mxu0 0.0
        %702 = vmatprep.subr.mxu0 0.0
        %703 = vmatpush2.msra.mxu0 0.0
        %704 = vmatprep.subr.mxu0 0.0
        %705 = vmatpush2.msra.mxu0 0.0
        %706 = vmatprep.mubr.f32.mxu0 0.0
        %707 = vmatmul.mubr.f32.gmra.mxu0 %v636
        %v708 = vpop.f32.mrf.mxu0
        %v709 = vadd.f32 0.0, %v708
        %v710 = vpop.f32.mrf.mxu0
        %v711 = vadd.f32 0.0, %v710
        %712 = vdwg.mxu0
        %v713 = vadd.f32 %v631, %v709
        %v714 = vadd.f32 %v632, %v711
        %715 = vrot.lane.b32.xlu0 %v207, 127
        %v716 = vpop.permute.xlu0 %715
        %717 = vrot.lane.b32.xlu0 %v209, 127
        %v718 = vpop.permute.xlu0 %717
        %vm719 = vcmp.lt.s32.totalorder %v216, 127
        %v720 = vsel %vm719, %v716, %v718
        %v721 = vsel %vm719, %v718, %v716
        %s722 = scalar_lea.vmem %s2, 10
        %v723 = vld [vmem:[%s722] sm:$0x3]
        %v725 = vlaneseq
        %v726 = vshrl.u32 %v725, 7
        %v727 = vsub.s32 0, %v726
        %v728 = vrot.slane %v723, %v727
        %v729 = vlaneseq
        %v730 = vshrl.u32 %v729, 7
        %v731 = vsub.s32 1, %v730
        %v732 = vrot.slane %v723, %v731
        %v735 = vmul.f32 %v720, %v728
        %v736 = vmul.f32 %v721, %v732
        %s737 = scalar_lea.vmem %s1, 20
        %v738 = vld [vmem:[%s737] sm:$0xf]
        %v740 = vsel %vm259, %v738, 0
        %v743 = vsel %vm263, %v735, 0
        %v746 = vsel %vm263, %v736, 0
        %748 = vmatprep.subr.mxu0 0.0
        %749 = vmatpush1.msra.mxu0 0.0
        %750 = vmatprep.subr.mxu0 0.0
        %751 = vmatpush1.msra.mxu0 0.0
        %752 = vmatprep.subr.mxu0 0.0
        %753 = vmatpush1.msra.mxu0 0.0
        %754 = vmatprep.subr.mxu0 0.0
        %755 = vmatpush1.msra.mxu0 0.0
        %756 = vmatprep.subr.mxu0 0.0
        %757 = vmatpush1.msra.mxu0 0.0
        %758 = vmatprep.subr.mxu0 0.0
        %759 = vmatpush1.msra.mxu0 0.0
        %760 = vmatprep.subr.mxu0 0.0
        %761 = vmatpush1.msra.mxu0 0.0
        %762 = vmatprep.subr.mxu0 0.0
        %763 = vmatpush1.msra.mxu0 0.0
        %764 = vmatprep.subr.mxu0 0.0
        %765 = vmatpush1.msra.mxu0 0.0
        %766 = vmatprep.subr.mxu0 0.0
        %767 = vmatpush1.msra.mxu0 0.0
        %768 = vmatprep.subr.mxu0 0.0
        %769 = vmatpush1.msra.mxu0 0.0
        %770 = vmatprep.subr.mxu0 0.0
        %771 = vmatpush1.msra.mxu0 0.0
        %772 = vmatprep.subr.mxu0 0.0
        %773 = vmatpush1.msra.mxu0 0.0
        %774 = vmatprep.subr.mxu0 0.0
        %775 = vmatpush1.msra.mxu0 0.0
        %776 = vmatprep.subr.mxu0 0.0
        %777 = vmatpush1.msra.mxu0 0.0
        %778 = vmatprep.subr.mxu0 %v746
        %779 = vmatpush1.msra.mxu0 %v743
        %780 = vmatprep.subr.mxu0 0.0
        %781 = vmatpush2.msra.mxu0 0.0
        %782 = vmatprep.subr.mxu0 0.0
        %783 = vmatpush2.msra.mxu0 0.0
        %784 = vmatprep.subr.mxu0 0.0
        %785 = vmatpush2.msra.mxu0 0.0
        %786 = vmatprep.subr.mxu0 0.0
        %787 = vmatpush2.msra.mxu0 0.0
        %788 = vmatprep.subr.mxu0 0.0
        %789 = vmatpush2.msra.mxu0 0.0
        %790 = vmatprep.subr.mxu0 0.0
        %791 = vmatpush2.msra.mxu0 0.0
        %792 = vmatprep.subr.mxu0 0.0
        %793 = vmatpush2.msra.mxu0 0.0
        %794 = vmatprep.subr.mxu0 0.0
        %795 = vmatpush2.msra.mxu0 0.0
        %796 = vmatprep.subr.mxu0 0.0
        %797 = vmatpush2.msra.mxu0 0.0
        %798 = vmatprep.subr.mxu0 0.0
        %799 = vmatpush2.msra.mxu0 0.0
        %800 = vmatprep.subr.mxu0 0.0
        %801 = vmatpush2.msra.mxu0 0.0
        %802 = vmatprep.subr.mxu0 0.0
        %803 = vmatpush2.msra.mxu0 0.0
        %804 = vmatprep.subr.mxu0 0.0
        %805 = vmatpush2.msra.mxu0 0.0
        %806 = vmatprep.subr.mxu0 0.0
        %807 = vmatpush2.msra.mxu0 0.0
        %808 = vmatprep.subr.mxu0 0.0
        %809 = vmatpush2.msra.mxu0 0.0
        %810 = vmatprep.subr.mxu0 0.0
        %811 = vmatpush2.msra.mxu0 0.0
        %812 = vmatprep.mubr.f32.mxu0 0.0
        %813 = vmatmul.mubr.f32.gmra.mxu0 %v740
        %v814 = vpop.f32.mrf.mxu0
        %v815 = vadd.f32 0.0, %v814
        %v816 = vpop.f32.mrf.mxu0
        %v817 = vadd.f32 0.0, %v816
        %818 = vdwg.mxu0
        %v819 = vadd.f32 %v713, %v815
        %v820 = vadd.f32 %v714, %v817
        %821 = vrot.lane.b32.xlu0 %v207, 113
        %v822 = vpop.permute.xlu0 %821
        %823 = vrot.lane.b32.xlu0 %v209, 113
        %v824 = vpop.permute.xlu0 %823
        %vm825 = vcmp.lt.s32.totalorder %v216, 113
        %v826 = vsel %vm825, %v822, %v824
        %v827 = vsel %vm825, %v824, %v822
        %s828 = scalar_lea.vmem %s2, 12
        %v829 = vld [vmem:[%s828] sm:$0x3]
        %v831 = vlaneseq
        %v832 = vshrl.u32 %v831, 7
        %v833 = vsub.s32 0, %v832
        %v834 = vrot.slane %v829, %v833
        %v835 = vlaneseq
        %v836 = vshrl.u32 %v835, 7
        %v837 = vsub.s32 1, %v836
        %v838 = vrot.slane %v829, %v837
        %v841 = vmul.f32 %v826, %v834
        %v842 = vmul.f32 %v827, %v838
        %s843 = scalar_lea.vmem %s1, 24
        %v844 = vld [vmem:[%s843] sm:$0xf]
        %v846 = vsel %vm259, %v844, 0
        %v849 = vsel %vm263, %v841, 0
        %v852 = vsel %vm263, %v842, 0
        %854 = vmatprep.subr.mxu0 0.0
        %855 = vmatpush1.msra.mxu0 0.0
        %856 = vmatprep.subr.mxu0 0.0
        %857 = vmatpush1.msra.mxu0 0.0
        %858 = vmatprep.subr.mxu0 0.0
        %859 = vmatpush1.msra.mxu0 0.0
        %860 = vmatprep.subr.mxu0 0.0
        %861 = vmatpush1.msra.mxu0 0.0
        %862 = vmatprep.subr.mxu0 0.0
        %863 = vmatpush1.msra.mxu0 0.0
        %864 = vmatprep.subr.mxu0 0.0
        %865 = vmatpush1.msra.mxu0 0.0
        %866 = vmatprep.subr.mxu0 0.0
        %867 = vmatpush1.msra.mxu0 0.0
        %868 = vmatprep.subr.mxu0 0.0
        %869 = vmatpush1.msra.mxu0 0.0
        %870 = vmatprep.subr.mxu0 0.0
        %871 = vmatpush1.msra.mxu0 0.0
        %872 = vmatprep.subr.mxu0 0.0
        %873 = vmatpush1.msra.mxu0 0.0
        %874 = vmatprep.subr.mxu0 0.0
        %875 = vmatpush1.msra.mxu0 0.0
        %876 = vmatprep.subr.mxu0 0.0
        %877 = vmatpush1.msra.mxu0 0.0
        %878 = vmatprep.subr.mxu0 0.0
        %879 = vmatpush1.msra.mxu0 0.0
        %880 = vmatprep.subr.mxu0 0.0
        %881 = vmatpush1.msra.mxu0 0.0
        %882 = vmatprep.subr.mxu0 0.0
        %883 = vmatpush1.msra.mxu0 0.0
        %884 = vmatprep.subr.mxu0 %v852
        %885 = vmatpush1.msra.mxu0 %v849
        %886 = vmatprep.subr.mxu0 0.0
        %887 = vmatpush2.msra.mxu0 0.0
        %888 = vmatprep.subr.mxu0 0.0
        %889 = vmatpush2.msra.mxu0 0.0
        %890 = vmatprep.subr.mxu0 0.0
        %891 = vmatpush2.msra.mxu0 0.0
        %892 = vmatprep.subr.mxu0 0.0
        %893 = vmatpush2.msra.mxu0 0.0
        %894 = vmatprep.subr.mxu0 0.0
        %895 = vmatpush2.msra.mxu0 0.0
        %896 = vmatprep.subr.mxu0 0.0
        %897 = vmatpush2.msra.mxu0 0.0
        %898 = vmatprep.subr.mxu0 0.0
        %899 = vmatpush2.msra.mxu0 0.0
        %900 = vmatprep.subr.mxu0 0.0
        %901 = vmatpush2.msra.mxu0 0.0
        %902 = vmatprep.subr.mxu0 0.0
        %903 = vmatpush2.msra.mxu0 0.0
        %904 = vmatprep.subr.mxu0 0.0
        %905 = vmatpush2.msra.mxu0 0.0
        %906 = vmatprep.subr.mxu0 0.0
        %907 = vmatpush2.msra.mxu0 0.0
        %908 = vmatprep.subr.mxu0 0.0
        %909 = vmatpush2.msra.mxu0 0.0
        %910 = vmatprep.subr.mxu0 0.0
        %911 = vmatpush2.msra.mxu0 0.0
        %912 = vmatprep.subr.mxu0 0.0
        %913 = vmatpush2.msra.mxu0 0.0
        %914 = vmatprep.subr.mxu0 0.0
        %915 = vmatpush2.msra.mxu0 0.0
        %916 = vmatprep.subr.mxu0 0.0
        %917 = vmatpush2.msra.mxu0 0.0
        %918 = vmatprep.mubr.f32.mxu0 0.0
        %919 = vmatmul.mubr.f32.gmra.mxu0 %v846
        %v920 = vpop.f32.mrf.mxu0
        %v921 = vadd.f32 0.0, %v920
        %v922 = vpop.f32.mrf.mxu0
        %v923 = vadd.f32 0.0, %v922
        %924 = vdwg.mxu0
        %v925 = vadd.f32 %v819, %v921
        %v926 = vadd.f32 %v820, %v923
        %927 = vrot.lane.b32.xlu0 %v207, 112
        %v928 = vpop.permute.xlu0 %927
        %929 = vrot.lane.b32.xlu0 %v209, 112
        %v930 = vpop.permute.xlu0 %929
        %vm931 = vcmp.lt.s32.totalorder %v216, 112
        %v932 = vsel %vm931, %v928, %v930
        %v933 = vsel %vm931, %v930, %v928
        %s934 = scalar_lea.vmem %s2, 14
        %v935 = vld [vmem:[%s934] sm:$0x3]
        %v937 = vlaneseq
        %v938 = vshrl.u32 %v937, 7
        %v939 = vsub.s32 0, %v938
        %v940 = vrot.slane %v935, %v939
        %v941 = vlaneseq
        %v942 = vshrl.u32 %v941, 7
        %v943 = vsub.s32 1, %v942
        %v944 = vrot.slane %v935, %v943
        %v947 = vmul.f32 %v932, %v940
        %v948 = vmul.f32 %v933, %v944
        %s949 = scalar_lea.vmem %s1, 28
        %v950 = vld [vmem:[%s949] sm:$0xf]
        %v952 = vsel %vm259, %v950, 0
        %v955 = vsel %vm263, %v947, 0
        %v958 = vsel %vm263, %v948, 0
        %960 = vmatprep.subr.mxu0 0.0
        %961 = vmatpush1.msra.mxu0 0.0
        %962 = vmatprep.subr.mxu0 0.0
        %963 = vmatpush1.msra.mxu0 0.0
        %964 = vmatprep.subr.mxu0 0.0
        %965 = vmatpush1.msra.mxu0 0.0
        %966 = vmatprep.subr.mxu0 0.0
        %967 = vmatpush1.msra.mxu0 0.0
        %968 = vmatprep.subr.mxu0 0.0
        %969 = vmatpush1.msra.mxu0 0.0
        %970 = vmatprep.subr.mxu0 0.0
        %971 = vmatpush1.msra.mxu0 0.0
        %972 = vmatprep.subr.mxu0 0.0
        %973 = vmatpush1.msra.mxu0 0.0
        %974 = vmatprep.subr.mxu0 0.0
        %975 = vmatpush1.msra.mxu0 0.0
        %976 = vmatprep.subr.mxu0 0.0
        %977 = vmatpush1.msra.mxu0 0.0
        %978 = vmatprep.subr.mxu0 0.0
        %979 = vmatpush1.msra.mxu0 0.0
        %980 = vmatprep.subr.mxu0 0.0
        %981 = vmatpush1.msra.mxu0 0.0
        %982 = vmatprep.subr.mxu0 0.0
        %983 = vmatpush1.msra.mxu0 0.0
        %984 = vmatprep.subr.mxu0 0.0
        %985 = vmatpush1.msra.mxu0 0.0
        %986 = vmatprep.subr.mxu0 0.0
        %987 = vmatpush1.msra.mxu0 0.0
        %988 = vmatprep.subr.mxu0 0.0
        %989 = vmatpush1.msra.mxu0 0.0
        %990 = vmatprep.subr.mxu0 %v958
        %991 = vmatpush1.msra.mxu0 %v955
        %992 = vmatprep.subr.mxu0 0.0
        %993 = vmatpush2.msra.mxu0 0.0
        %994 = vmatprep.subr.mxu0 0.0
        %995 = vmatpush2.msra.mxu0 0.0
        %996 = vmatprep.subr.mxu0 0.0
        %997 = vmatpush2.msra.mxu0 0.0
        %998 = vmatprep.subr.mxu0 0.0
        %999 = vmatpush2.msra.mxu0 0.0
        %1000 = vmatprep.subr.mxu0 0.0
        %1001 = vmatpush2.msra.mxu0 0.0
        %1002 = vmatprep.subr.mxu0 0.0
        %1003 = vmatpush2.msra.mxu0 0.0
        %1004 = vmatprep.subr.mxu0 0.0
        %1005 = vmatpush2.msra.mxu0 0.0
        %1006 = vmatprep.subr.mxu0 0.0
        %1007 = vmatpush2.msra.mxu0 0.0
        %1008 = vmatprep.subr.mxu0 0.0
        %1009 = vmatpush2.msra.mxu0 0.0
        %1010 = vmatprep.subr.mxu0 0.0
        %1011 = vmatpush2.msra.mxu0 0.0
        %1012 = vmatprep.subr.mxu0 0.0
        %1013 = vmatpush2.msra.mxu0 0.0
        %1014 = vmatprep.subr.mxu0 0.0
        %1015 = vmatpush2.msra.mxu0 0.0
        %1016 = vmatprep.subr.mxu0 0.0
        %1017 = vmatpush2.msra.mxu0 0.0
        %1018 = vmatprep.subr.mxu0 0.0
        %1019 = vmatpush2.msra.mxu0 0.0
        %1020 = vmatprep.subr.mxu0 0.0
        %1021 = vmatpush2.msra.mxu0 0.0
        %1022 = vmatprep.subr.mxu0 0.0
        %1023 = vmatpush2.msra.mxu0 0.0
        %1024 = vmatprep.mubr.f32.mxu0 0.0
        %1025 = vmatmul.mubr.f32.gmra.mxu0 %v952
        %v1026 = vpop.f32.mrf.mxu0
        %v1027 = vadd.f32 0.0, %v1026
        %v1028 = vpop.f32.mrf.mxu0
        %v1029 = vadd.f32 0.0, %v1028
        %1030 = vdwg.mxu0
        %v1031 = vadd.f32 %v925, %v1027
        %v1032 = vadd.f32 %v926, %v1029
        %1033 = vrot.lane.b32.xlu0 %v207, 111
        %v1034 = vpop.permute.xlu0 %1033
        %1035 = vrot.lane.b32.xlu0 %v209, 111
        %v1036 = vpop.permute.xlu0 %1035
        %vm1037 = vcmp.lt.s32.totalorder %v216, 111
        %v1038 = vsel %vm1037, %v1034, %v1036
        %v1039 = vsel %vm1037, %v1036, %v1034
        %s1040 = scalar_lea.vmem %s2, 16
        %v1041 = vld [vmem:[%s1040] sm:$0x3]
        %v1043 = vlaneseq
        %v1044 = vshrl.u32 %v1043, 7
        %v1045 = vsub.s32 0, %v1044
        %v1046 = vrot.slane %v1041, %v1045
        %v1047 = vlaneseq
        %v1048 = vshrl.u32 %v1047, 7
        %v1049 = vsub.s32 1, %v1048
        %v1050 = vrot.slane %v1041, %v1049
        %v1053 = vmul.f32 %v1038, %v1046
        %v1054 = vmul.f32 %v1039, %v1050
        %s1055 = scalar_lea.vmem %s1, 32
        %v1056 = vld [vmem:[%s1055] sm:$0xf]
        %v1058 = vsel %vm259, %v1056, 0
        %v1061 = vsel %vm263, %v1053, 0
        %v1064 = vsel %vm263, %v1054, 0
        %1066 = vmatprep.subr.mxu0 0.0
        %1067 = vmatpush1.msra.mxu0 0.0
        %1068 = vmatprep.subr.mxu0 0.0
        %1069 = vmatpush1.msra.mxu0 0.0
        %1070 = vmatprep.subr.mxu0 0.0
        %1071 = vmatpush1.msra.mxu0 0.0
        %1072 = vmatprep.subr.mxu0 0.0
        %1073 = vmatpush1.msra.mxu0 0.0
        %1074 = vmatprep.subr.mxu0 0.0
        %1075 = vmatpush1.msra.mxu0 0.0
        %1076 = vmatprep.subr.mxu0 0.0
        %1077 = vmatpush1.msra.mxu0 0.0
        %1078 = vmatprep.subr.mxu0 0.0
        %1079 = vmatpush1.msra.mxu0 0.0
        %1080 = vmatprep.subr.mxu0 0.0
        %1081 = vmatpush1.msra.mxu0 0.0
        %1082 = vmatprep.subr.mxu0 0.0
        %1083 = vmatpush1.msra.mxu0 0.0
        %1084 = vmatprep.subr.mxu0 0.0
        %1085 = vmatpush1.msra.mxu0 0.0
        %1086 = vmatprep.subr.mxu0 0.0
        %1087 = vmatpush1.msra.mxu0 0.0
        %1088 = vmatprep.subr.mxu0 0.0
        %1089 = vmatpush1.msra.mxu0 0.0
        %1090 = vmatprep.subr.mxu0 0.0
        %1091 = vmatpush1.msra.mxu0 0.0
        %1092 = vmatprep.subr.mxu0 0.0
        %1093 = vmatpush1.msra.mxu0 0.0
        %1094 = vmatprep.subr.mxu0 0.0
        %1095 = vmatpush1.msra.mxu0 0.0
        %1096 = vmatprep.subr.mxu0 %v1064
        %1097 = vmatpush1.msra.mxu0 %v1061
        %1098 = vmatprep.subr.mxu0 0.0
        %1099 = vmatpush2.msra.mxu0 0.0
        %1100 = vmatprep.subr.mxu0 0.0
        %1101 = vmatpush2.msra.mxu0 0.0
        %1102 = vmatprep.subr.mxu0 0.0
        %1103 = vmatpush2.msra.mxu0 0.0
        %1104 = vmatprep.subr.mxu0 0.0
        %1105 = vmatpush2.msra.mxu0 0.0
        %1106 = vmatprep.subr.mxu0 0.0
        %1107 = vmatpush2.msra.mxu0 0.0
        %1108 = vmatprep.subr.mxu0 0.0
        %1109 = vmatpush2.msra.mxu0 0.0
        %1110 = vmatprep.subr.mxu0 0.0
        %1111 = vmatpush2.msra.mxu0 0.0
        %1112 = vmatprep.subr.mxu0 0.0
        %1113 = vmatpush2.msra.mxu0 0.0
        %1114 = vmatprep.subr.mxu0 0.0
        %1115 = vmatpush2.msra.mxu0 0.0
        %1116 = vmatprep.subr.mxu0 0.0
        %1117 = vmatpush2.msra.mxu0 0.0
        %1118 = vmatprep.subr.mxu0 0.0
        %1119 = vmatpush2.msra.mxu0 0.0
        %1120 = vmatprep.subr.mxu0 0.0
        %1121 = vmatpush2.msra.mxu0 0.0
        %1122 = vmatprep.subr.mxu0 0.0
        %1123 = vmatpush2.msra.mxu0 0.0
        %1124 = vmatprep.subr.mxu0 0.0
        %1125 = vmatpush2.msra.mxu0 0.0
        %1126 = vmatprep.subr.mxu0 0.0
        %1127 = vmatpush2.msra.mxu0 0.0
        %1128 = vmatprep.subr.mxu0 0.0
        %1129 = vmatpush2.msra.mxu0 0.0
        %1130 = vmatprep.mubr.f32.mxu0 0.0
        %1131 = vmatmul.mubr.f32.gmra.mxu0 %v1058
        %v1132 = vpop.f32.mrf.mxu0
        %v1133 = vadd.f32 0.0, %v1132
        %v1134 = vpop.f32.mrf.mxu0
        %v1135 = vadd.f32 0.0, %v1134
        %1136 = vdwg.mxu0
        %v1137 = vadd.f32 %v1031, %v1133
        %v1138 = vadd.f32 %v1032, %v1135
        %v1141 = vcombine.low %v1137, %v1138
        %1143 = vst [vmem:[%s191] sm:$0xff] %v1141
        %v1144 = vsel %vm263, %v1137, 0.0
        %v1145 = vsel %vm263, %v1138, 0.0
        %v1146 = vadd.f32 %v1144, %v1145
        %1147 = vadd.xlane.f32.xlu0 %v1146
        %v1148 = vpop.xlane.xlu0 %1147
        %v1149 = vmul.f32 %v1137, %v1137
        %v1150 = vmul.f32 %v1138, %v1138
        %v1151 = vsel %vm263, %v1149, 0.0
        %v1152 = vsel %vm263, %v1150, 0.0
        %v1153 = vadd.f32 %v1151, %v1152
        %1154 = vadd.xlane.f32.xlu0 %v1153
        %v1155 = vpop.xlane.xlu0 %1154
        %vm1156 = vcmask 7168
        %v1157 = vsel %vm1156, %v1148, %v1155
        %vm1158 = vcmask 11264
        %1159 = vst.msk [vmem:[%s206] sm:$0xf] %vm1158, %v1157
        %s1160 = sand.u32 %s95, 1
        %s1161 = scalar_lea.sflag [#allocation3], %s1160
        %s1162 = sand.u32 %s95, 1
        %s1163 = smul.addr %s1162, 8
        %s1164 = scalar_lea.vmem [#allocation2], %s1163
        %p1165 = scmp.lt.s32.totalorder %s19, 1
        %s1166 = scalar_select %p1165, %s19, 1
        %s1167 = smul.addr %s1166, 4
        %s1168 = scalar_lea.vmem %s4, %s1167
        // Predicated region
        $region33: #{tpu_custom_call.1} parent=31 // pred_check
          %p1169 = pneg %p105
        $region34: #{tpu_custom_call.1} parent=31 // pred_check_branch
          %1171 = sbr.rel (%p1169) target = $region36
        $region35: #{tpu_custom_call.1} parent=31 // pred_region
          %s1173 = ssub.s32 128, 128
          %1174 = vsyncadd %s1161, %s1173
          %s1175 = smul.addr %s19, 2
          %s1176 = smul.addr %s1175, 64
          %s1177 = scalar_lea.hbm %s3, %s1176
          %s1179 = sshll.u32 %s1164, 4
          %s1180 = int_to_ptr.vmem [resolvable:$true] %s1179
          %1182 = dma.vmem_to_hbm [thread:$0]  %s1180, 128, %s1177, %s1161
        $region36: #{tpu_custom_call.1} parent=31 // pred_fallthru
          _
        // Predicated region
        $region37: #{tpu_custom_call.1} parent=31 // pred_check
          %p1183 = pneg %p131
        $region38: #{tpu_custom_call.1} parent=31 // pred_check_branch
          %1185 = sbr.rel (%p1183) target = $region40
        $region39: #{tpu_custom_call.1} parent=31 // pred_region
          _
        $region40: #{tpu_custom_call.1} parent=31 // pred_fallthru
          _
      $region32: #{tpu_custom_call.1} parent=5 // pred_fallthru
        _
      %p1186 = scmp.le.s32.totalorder 2, %s14
      // Predicated region
      $region41: #{tpu_custom_call.1} parent=5 // pred_check
        %p1187 = pneg %p1186
      $region42: #{tpu_custom_call.1} parent=5 // pred_check_branch
        %1189 = sbr.rel (%p1187) target = $region44
      $region43: #{tpu_custom_call.1} parent=5 // pred_region
        %s1190 = ssub.s32 %s14, 2
        // Predicated region
        $region45: #{tpu_custom_call.1} parent=43 // pred_check
          %p1191 = pneg %p111
        $region46: #{tpu_custom_call.1} parent=43 // pred_check_branch
          %1193 = sbr.rel (%p1191) target = $region48
        $region47: #{tpu_custom_call.1} parent=43 // pred_region
          %s1194 = sand.u32 %s96, 1
          %s1195 = scalar_lea.sflag [#allocation3], %s1194
          %s1196 = sand.u32 %s96, 1
          %s1197 = smul.addr %s1196, 8
          %s1198 = scalar_lea.vmem [#allocation2], %s1197
          %1199 = dma.done %s1195, 128
        $region48: #{tpu_custom_call.1} parent=43 // pred_fallthru
          _
        // Predicated region
        $region49: #{tpu_custom_call.1} parent=43 // pred_check
          %p1200 = pneg %p137
        $region50: #{tpu_custom_call.1} parent=43 // pred_check_branch
          %1202 = sbr.rel (%p1200) target = $region52
        $region51: #{tpu_custom_call.1} parent=43 // pred_region
          %p1203 = scmp.lt.s32.totalorder %s20, 1
          %s1204 = scalar_select %p1203, %s20, 1
          %s1205 = smul.addr %s1204, 4
          %s1206 = scalar_lea.vmem %s4, %s1205
        $region52: #{tpu_custom_call.1} parent=43 // pred_fallthru
          _
      $region44: #{tpu_custom_call.1} parent=5 // pred_fallthru
        _
    $region6: #{tpu_custom_call.1} parent=1 // loop_footer
      %s18 = sadd.s32 1, %s14
    $region7: #{tpu_custom_call.1} parent=1 // loop_footer_branch
      %13 = sbr.rel target = $region3
    $region8: #{tpu_custom_call.1} parent=1 // loop_exit
      _
    %1207 = vsyncpa [#allocation3], 1
    %s1208 = scalar_lea.sflag [#allocation3], 1
    %1209 = vsyncpa %s1208, 1

</llo_original>
